<compile_context>
chip_gen: v7x
topology: tpu7x:2x2x1
jax: 0.10.0
libtpu: 0.0.40
codegen_flags: <defaults>
</compile_context>

<pallas_src>
import numpy as np
import jax
import jax.numpy as jnp
from jax.experimental import pallas as pl
from jax.experimental.pallas import tpu as pltpu


def _round_up(x, m):
    return ((x + m - 1) // m) * m


def actor_kernel(x_ref, w1_ref, b1_ref, w2_ref, b2_ref, w3_ref, b3_ref,
                 gain_ref, off_ref, o_ref):
    s_dim = x_ref.shape[1]

    x = x_ref[...]                    # (TM, S)   f32
    w1 = w1_ref[...]                  # (S, 256)  f32

    # ---- layer 1: K = state_dim is tiny -> unrolled VPU broadcast-FMA.
    # Keeps the MXU free for the 256x256 layer; avoids padding K=4 up to the
    # full systolic contraction dim.
    acc = x[:, 0:1] * w1[0:1, :] + b1_ref[...]
    for k in range(1, s_dim):         # static unroll (S is a small constant)
        acc = acc + x[:, k:k + 1] * w1[k:k + 1, :]
    h1 = jnp.maximum(acc, 0.0)

    # ---- layer 2: 256x256 bf16 MXU matmul, f32 accumulation.
    h2 = jnp.maximum(
        jnp.dot(h1.astype(jnp.bfloat16), w2_ref[...],
                preferred_element_type=jnp.float32) + b2_ref[...], 0.0)

    # ---- layer 3 + epilogue: tanh on EUP, scale/offset on VPU.
    mu = jnp.tanh(
        jnp.dot(h2.astype(jnp.bfloat16), w3_ref[...],
                preferred_element_type=jnp.float32) + b3_ref[...])
    o_ref[...] = (gain_ref[...] * mu + off_ref[...]).astype(o_ref.dtype)


def actor_forward(x, params, *, tm=None):
    """x: (B, state_dim) f32. params: dict of weights/biases/gain/off."""
    B, S = x.shape
    H = params["w2"].shape[0]            # hidden = 256
    A = params["w3"].shape[1]            # action_dim

    # Batch tile: multiple of 8 (sublane), capped at 256 (MXU-aligned on all
    # generations). Tiny vs the 64 MiB v7x VMEM budget.
    if tm is None:
        tm = min(256, _round_up(max(B, 8), 8))
    b_pad = _round_up(B, tm)
    if b_pad != B:
        x = jnp.pad(x, ((0, b_pad - B), (0, 0)))
    grid = (b_pad // tm,)

    resident = lambda i: (0, 0)          # weights/biases: DMA'd once, stay in VMEM
    in_specs = [
        pl.BlockSpec((tm, S), lambda i: (i, 0)),   # x streams over batch
        pl.BlockSpec((S, H), resident),            # w1 (f32, 4 KB)
        pl.BlockSpec((1, H), resident),            # b1
        pl.BlockSpec((H, H), resident),            # w2 (bf16, 128 KB)
        pl.BlockSpec((1, H), resident),            # b2
        pl.BlockSpec((H, A), resident),            # w3 (bf16)
        pl.BlockSpec((1, A), resident),            # b3
        pl.BlockSpec((1, A), resident),            # gain
        pl.BlockSpec((1, A), resident),            # off
    ]
    out_specs = pl.BlockSpec((tm, A), lambda i: (i, 0))

    param_list = (params["w1"], params["b1"], params["w2"], params["b2"],
                  params["w3"], params["b3"], params["gain"], params["off"])
    flops = 2 * b_pad * (S * H + H * H + H * A)
    bytes_accessed = (x.size * x.dtype.itemsize
                      + sum(int(np.prod(p.shape)) * p.dtype.itemsize
                            for p in param_list)
                      + b_pad * A * 4)
    cost = pl.CostEstimate(flops=flops,
                           transcendentals=b_pad * A,
                           bytes_accessed=int(bytes_accessed))

    out = pl.pallas_call(
        actor_kernel,
        out_shape=jax.ShapeDtypeStruct((b_pad, A), jnp.float32),
        grid=grid,
        in_specs=in_specs,
        out_specs=out_specs,
        compiler_params=pltpu.CompilerParams(
            dimension_semantics=("parallel",)),   # 2 TCs on v7x
        cost_estimate=cost,
    )(x, *param_list)
    return out[:B]


def init_actor_params(key, state_dim, action_dim, a_min, a_max):
    """Deterministic synthetic init mirroring the PyTorch shapes/ranges.

    Note: PyTorch code uses f = 1/sqrt(weight.size()[0]) which is the
    *output* dim (256) for fc1/fc2 — reproduced here for fidelity.
    """
    k1, k2, k3, k4, k5, k6 = jax.random.split(key, 6)
    f1 = 1.0 / np.sqrt(256.0)
    f2 = 1.0 / np.sqrt(256.0)
    f3 = 0.003
    # weights stored as (in, out) == transpose of torch's (out, in)
    w1 = jax.random.uniform(k1, (state_dim, 256), jnp.float32, -f1, f1)
    b1 = jax.random.uniform(k2, (1, 256), jnp.float32, -f1, f1)
    w2 = jax.random.uniform(k3, (256, 256), jnp.float32, -f2, f2)
    b2 = jax.random.uniform(k4, (1, 256), jnp.float32, -f2, f2)
    w3 = jax.random.uniform(k5, (256, action_dim), jnp.float32, -f3, f3)
    b3 = jax.random.uniform(k6, (1, action_dim), jnp.float32, -f3, f3)
    a_min = jnp.asarray(a_min, jnp.float32).reshape(1, action_dim)
    a_max = jnp.asarray(a_max, jnp.float32).reshape(1, action_dim)
    off = (a_min + a_max) / 2.0
    gain = a_max - off
    # bf16 weights for the MXU layers; w1 stays f32 (VPU path, only 4 KB).
    return dict(w1=w1, b1=b1,
                w2=w2.astype(jnp.bfloat16), b2=b2,
                w3=w3.astype(jnp.bfloat16), b3=b3,
                gain=gain, off=off)


def actor_forward_ref(x, p):
    """Pure-JAX reference mirroring the kernel's numerics (bf16 MXU layers)."""
    h1 = jnp.maximum(
        jnp.dot(x, p["w1"], precision=jax.lax.Precision.HIGHEST) + p["b1"], 0.0)
    h2 = jnp.maximum(
        jnp.dot(h1.astype(jnp.bfloat16), p["w2"],
                preferred_element_type=jnp.float32) + p["b2"], 0.0)
    mu = jnp.tanh(
        jnp.dot(h2.astype(jnp.bfloat16), p["w3"],
                preferred_element_type=jnp.float32) + p["b3"])
    return p["gain"] * mu + p["off"]


if __name__ == "__main__":
    key = jax.random.PRNGKey(0)
    kp, kx = jax.random.split(key)

    state_dim = 4     # CartPole observation dim
    action_dim = 1    # single continuous action
    a_min = [-10.0]
    a_max = [10.0]
    batch = 2

    params = init_actor_params(kp, state_dim, action_dim, a_min, a_max)
    x = jax.random.normal(kx, (batch, state_dim), jnp.float32)

    out = actor_forward(x, params)
    out = jax.block_until_ready(out)

    ref = actor_forward_ref(x, params)
    np.testing.assert_allclose(np.asarray(out), np.asarray(ref),
                               rtol=1e-2, atol=1e-2)
    print("KERNEL_OK")
</pallas_src>

<mosaic_0001>
module attributes {stable_mosaic.version = 11 : i64} {
  func.func @actor_kernel(%arg0: i32, %arg1: memref<8x4xf32, #tpu.memory_space<vmem>>, %arg2: memref<4x256xf32, #tpu.memory_space<vmem>>, %arg3: memref<1x256xf32, #tpu.memory_space<vmem>>, %arg4: memref<256x256xbf16, #tpu.memory_space<vmem>>, %arg5: memref<1x256xf32, #tpu.memory_space<vmem>>, %arg6: memref<256x1xbf16, #tpu.memory_space<vmem>>, %arg7: memref<1x1xf32, #tpu.memory_space<vmem>>, %arg8: memref<1x1xf32, #tpu.memory_space<vmem>>, %arg9: memref<1x1xf32, #tpu.memory_space<vmem>>, %arg10: memref<8x1xf32, #tpu.memory_space<vmem>>) attributes {dimension_semantics = [#tpu.dimension_semantics<parallel>], iteration_bounds = array<i64: 1>, scalar_prefetch = 0 : i64, scratch_operands = 0 : i64, tpu.core_type = #tpu.core_type<tc>, window_params = [{transform_indices = @transform_0, window_bounds = array<i64: 8, 4>}, {pipeline_mode = #tpu.pipeline_mode<synchronous>, transform_indices = @transform_1, window_bounds = array<i64: 4, 256>}, {pipeline_mode = #tpu.pipeline_mode<synchronous>, transform_indices = @transform_2, window_bounds = array<i64: 1, 256>}, {pipeline_mode = #tpu.pipeline_mode<synchronous>, transform_indices = @transform_3, window_bounds = array<i64: 256, 256>}, {pipeline_mode = #tpu.pipeline_mode<synchronous>, transform_indices = @transform_4, window_bounds = array<i64: 1, 256>}, {pipeline_mode = #tpu.pipeline_mode<synchronous>, transform_indices = @transform_5, window_bounds = array<i64: 256, 1>}, {pipeline_mode = #tpu.pipeline_mode<synchronous>, transform_indices = @transform_6, window_bounds = array<i64: 1, 1>}, {pipeline_mode = #tpu.pipeline_mode<synchronous>, transform_indices = @transform_7, window_bounds = array<i64: 1, 1>}, {pipeline_mode = #tpu.pipeline_mode<synchronous>, transform_indices = @transform_8, window_bounds = array<i64: 1, 1>}, {transform_indices = @transform_9, window_bounds = array<i64: 8, 1>}]} {
    %c0 = arith.constant 0 : index
    %c0_0 = arith.constant 0 : index
    %0 = vector.load %arg1[%c0, %c0_0] : memref<8x4xf32, #tpu.memory_space<vmem>>, vector<8x4xf32>
    %c0_1 = arith.constant 0 : index
    %c0_2 = arith.constant 0 : index
    %1 = vector.load %arg2[%c0_1, %c0_2] : memref<4x256xf32, #tpu.memory_space<vmem>>, vector<4x256xf32>
    %2 = vector.extract_strided_slice %0 {offsets = [0, 0], sizes = [8, 1], strides = [1, 1]} : vector<8x4xf32> to vector<8x1xf32>
    %3 = vector.extract_strided_slice %1 {offsets = [0, 0], sizes = [1, 256], strides = [1, 1]} : vector<4x256xf32> to vector<1x256xf32>
    %4 = vector.broadcast %2 : vector<8x1xf32> to vector<8x256xf32>
    %5 = vector.broadcast %3 : vector<1x256xf32> to vector<8x256xf32>
    %6 = arith.mulf %4, %5 : vector<8x256xf32>
    %c0_3 = arith.constant 0 : index
    %c0_4 = arith.constant 0 : index
    %7 = vector.load %arg3[%c0_3, %c0_4] : memref<1x256xf32, #tpu.memory_space<vmem>>, vector<1x256xf32>
    %8 = vector.broadcast %7 : vector<1x256xf32> to vector<8x256xf32>
    %9 = arith.addf %6, %8 : vector<8x256xf32>
    %10 = vector.extract_strided_slice %0 {offsets = [0, 1], sizes = [8, 1], strides = [1, 1]} : vector<8x4xf32> to vector<8x1xf32>
    %11 = vector.extract_strided_slice %1 {offsets = [1, 0], sizes = [1, 256], strides = [1, 1]} : vector<4x256xf32> to vector<1x256xf32>
    %12 = vector.broadcast %10 : vector<8x1xf32> to vector<8x256xf32>
    %13 = vector.broadcast %11 : vector<1x256xf32> to vector<8x256xf32>
    %14 = arith.mulf %12, %13 : vector<8x256xf32>
    %15 = arith.addf %9, %14 : vector<8x256xf32>
    %16 = vector.extract_strided_slice %0 {offsets = [0, 2], sizes = [8, 1], strides = [1, 1]} : vector<8x4xf32> to vector<8x1xf32>
    %17 = vector.extract_strided_slice %1 {offsets = [2, 0], sizes = [1, 256], strides = [1, 1]} : vector<4x256xf32> to vector<1x256xf32>
    %18 = vector.broadcast %16 : vector<8x1xf32> to vector<8x256xf32>
    %19 = vector.broadcast %17 : vector<1x256xf32> to vector<8x256xf32>
    %20 = arith.mulf %18, %19 : vector<8x256xf32>
    %21 = arith.addf %15, %20 : vector<8x256xf32>
    %22 = vector.extract_strided_slice %0 {offsets = [0, 3], sizes = [8, 1], strides = [1, 1]} : vector<8x4xf32> to vector<8x1xf32>
    %23 = vector.extract_strided_slice %1 {offsets = [3, 0], sizes = [1, 256], strides = [1, 1]} : vector<4x256xf32> to vector<1x256xf32>
    %24 = vector.broadcast %22 : vector<8x1xf32> to vector<8x256xf32>
    %25 = vector.broadcast %23 : vector<1x256xf32> to vector<8x256xf32>
    %26 = arith.mulf %24, %25 : vector<8x256xf32>
    %27 = arith.addf %21, %26 : vector<8x256xf32>
    %cst = arith.constant 0.000000e+00 : f32
    %28 = vector.broadcast %cst : f32 to vector<8x256xf32>
    %29 = arith.maximumf %27, %28 : vector<8x256xf32>
    %30 = arith.truncf %29 : vector<8x256xf32> to vector<8x256xbf16>
    %c0_5 = arith.constant 0 : index
    %c0_6 = arith.constant 0 : index
    %31 = vector.load %arg4[%c0_5, %c0_6] : memref<256x256xbf16, #tpu.memory_space<vmem>>, vector<256x256xbf16>
    %cst_7 = arith.constant dense<0.000000e+00> : vector<8x256xf32>
    %32 = tpu.matmul %30, %31, %cst_7 {dimension_numbers = #tpu.dot_dimension_numbers<[1], [0], [0], [1], [0, 0, 1, 1], [], []>} : vector<8x256xbf16>, vector<256x256xbf16>, vector<8x256xf32> -> vector<8x256xf32>
    %c0_8 = arith.constant 0 : index
    %c0_9 = arith.constant 0 : index
    %33 = vector.load %arg5[%c0_8, %c0_9] : memref<1x256xf32, #tpu.memory_space<vmem>>, vector<1x256xf32>
    %34 = vector.broadcast %33 : vector<1x256xf32> to vector<8x256xf32>
    %35 = arith.addf %32, %34 : vector<8x256xf32>
    %cst_10 = arith.constant 0.000000e+00 : f32
    %36 = vector.broadcast %cst_10 : f32 to vector<8x256xf32>
    %37 = arith.maximumf %35, %36 : vector<8x256xf32>
    %38 = arith.truncf %37 : vector<8x256xf32> to vector<8x256xbf16>
    %c0_11 = arith.constant 0 : index
    %c0_12 = arith.constant 0 : index
    %39 = vector.load %arg6[%c0_11, %c0_12] : memref<256x1xbf16, #tpu.memory_space<vmem>>, vector<256x1xbf16>
    %cst_13 = arith.constant dense<0.000000e+00> : vector<8x1xf32>
    %40 = tpu.matmul %38, %39, %cst_13 {dimension_numbers = #tpu.dot_dimension_numbers<[1], [0], [0], [1], [0, 0, 1, 1], [], []>} : vector<8x256xbf16>, vector<256x1xbf16>, vector<8x1xf32> -> vector<8x1xf32>
    %c0_14 = arith.constant 0 : index
    %c0_15 = arith.constant 0 : index
    %41 = vector.load %arg7[%c0_14, %c0_15] : memref<1x1xf32, #tpu.memory_space<vmem>>, vector<1x1xf32>
    %42 = vector.broadcast %41 : vector<1x1xf32> to vector<8x1xf32>
    %43 = arith.addf %40, %42 : vector<8x1xf32>
    %44 = math.tanh %43 : vector<8x1xf32>
    %c0_16 = arith.constant 0 : index
    %c0_17 = arith.constant 0 : index
    %45 = vector.load %arg8[%c0_16, %c0_17] : memref<1x1xf32, #tpu.memory_space<vmem>>, vector<1x1xf32>
    %46 = vector.broadcast %45 : vector<1x1xf32> to vector<8x1xf32>
    %47 = arith.mulf %46, %44 : vector<8x1xf32>
    %c0_18 = arith.constant 0 : index
    %c0_19 = arith.constant 0 : index
    %48 = vector.load %arg9[%c0_18, %c0_19] : memref<1x1xf32, #tpu.memory_space<vmem>>, vector<1x1xf32>
    %49 = vector.broadcast %48 : vector<1x1xf32> to vector<8x1xf32>
    %50 = arith.addf %47, %49 : vector<8x1xf32>
    %c0_20 = arith.constant 0 : index
    %c0_21 = arith.constant 0 : index
    %51 = vector.load %arg10[%c0_20, %c0_21] : memref<8x1xf32, #tpu.memory_space<vmem>>, vector<8x1xf32>
    tpu.vector_store %arg10[%c0_20, %c0_21], %50 {strides = array<i32>} : memref<8x1xf32, #tpu.memory_space<vmem>>, vector<8x1xf32>,
    return
  }
  func.func @transform_0(%arg0: i32) -> (i32, i32) {
    %c0_i32 = arith.constant 0 : i32
    %c0_i32_0 = arith.constant 0 : i32
    return %arg0, %c0_i32 : i32, i32
  }
  func.func @transform_1(%arg0: i32) -> (i32, i32) {
    %c0_i32 = arith.constant 0 : i32
    %c0_i32_0 = arith.constant 0 : i32
    %c0_i32_1 = arith.constant 0 : i32
    return %c0_i32, %c0_i32_0 : i32, i32
  }
  func.func @transform_2(%arg0: i32) -> (i32, i32) {
    %c0_i32 = arith.constant 0 : i32
    %c0_i32_0 = arith.constant 0 : i32
    %c0_i32_1 = arith.constant 0 : i32
    return %c0_i32, %c0_i32_0 : i32, i32
  }
  func.func @transform_3(%arg0: i32) -> (i32, i32) {
    %c0_i32 = arith.constant 0 : i32
    %c0_i32_0 = arith.constant 0 : i32
    %c0_i32_1 = arith.constant 0 : i32
    return %c0_i32, %c0_i32_0 : i32, i32
  }
  func.func @transform_4(%arg0: i32) -> (i32, i32) {
    %c0_i32 = arith.constant 0 : i32
    %c0_i32_0 = arith.constant 0 : i32
    %c0_i32_1 = arith.constant 0 : i32
    return %c0_i32, %c0_i32_0 : i32, i32
  }
  func.func @transform_5(%arg0: i32) -> (i32, i32) {
    %c0_i32 = arith.constant 0 : i32
    %c0_i32_0 = arith.constant 0 : i32
    %c0_i32_1 = arith.constant 0 : i32
    return %c0_i32, %c0_i32_0 : i32, i32
  }
  func.func @transform_6(%arg0: i32) -> (i32, i32) {
    %c0_i32 = arith.constant 0 : i32
    %c0_i32_0 = arith.constant 0 : i32
    %c0_i32_1 = arith.constant 0 : i32
    return %c0_i32, %c0_i32_0 : i32, i32
  }
  func.func @transform_7(%arg0: i32) -> (i32, i32) {
    %c0_i32 = arith.constant 0 : i32
    %c0_i32_0 = arith.constant 0 : i32
    %c0_i32_1 = arith.constant 0 : i32
    return %c0_i32, %c0_i32_0 : i32, i32
  }
  func.func @transform_8(%arg0: i32) -> (i32, i32) {
    %c0_i32 = arith.constant 0 : i32
    %c0_i32_0 = arith.constant 0 : i32
    %c0_i32_1 = arith.constant 0 : i32
    return %c0_i32, %c0_i32_0 : i32, i32
  }
  func.func @transform_9(%arg0: i32) -> (i32, i32) {
    %c0_i32 = arith.constant 0 : i32
    %c0_i32_0 = arith.constant 0 : i32
    return %arg0, %c0_i32 : i32, i32
  }
}

</mosaic_0001>

<llo_original>
// kernel: tpu_custom_call.1
$region0: #{tpu_custom_call.1}
  #allocation0 [shape = 'u32[]', space=smem, size = 0x4, offset = 0x4, fixed_abs, tag = 'smem constant byte address 0x4 - core index']
  #allocation1 [shape = 'u32[144,128]{1,0:T(1,128)}', space=vmem, size = 0x12000, scoped, tag = 'internal scratch']
  #allocation2 [shape = 'f32[1,1]{1,0:T(1,128)S(1)}', space=vmem, size = 0x200, scoped, tag = 'scoped memory for tpu_custom_call.1']
  #allocation3 [shape = 'f32[1,1]{1,0:T(1,128)S(1)}', space=vmem, size = 0x200, scoped, tag = 'scoped memory for tpu_custom_call.1']
  #allocation4 [shape = 'f32[1,1]{1,0:T(1,128)S(1)}', space=vmem, size = 0x200, scoped, tag = 'scoped memory for tpu_custom_call.1']
  %s0 = inlined_call_operand.vmem [shape: f32[8,4], index: 0, kind: input, shape index: {}]
  %s1 = inlined_call_operand.vmem [shape: f32[4,256], index: 1, kind: input, shape index: {}]
  %s2 = inlined_call_operand.vmem [shape: f32[1,256], index: 2, kind: input, shape index: {}]
  %s3 = inlined_call_operand.hbm [shape: bf16[256,256], index: 3, kind: input, shape index: {}]
  %s4 = inlined_call_operand.vmem [shape: f32[1,256], index: 4, kind: input, shape index: {}]
  %s5 = inlined_call_operand.vmem [shape: bf16[256,1], index: 5, kind: input, shape index: {}]
  %s6 = inlined_call_operand.<no memory space> [shape: f32[1,1], index: 6, kind: input, shape index: {}]
  %s7 = inlined_call_operand.<no memory space> [shape: f32[1,1], index: 7, kind: input, shape index: {}]
  %s8 = inlined_call_operand.<no memory space> [shape: f32[1,1], index: 8, kind: input, shape index: {}]
  %s9 = inlined_call_operand.vmem [shape: f32[8,1], index: 9, kind: output, shape index: {}]
  %s10 = sld [smem:[#allocation0]]
  $region50: #{tpu_custom_call.1} parent=0
    _
  %s12 = ssub.s32 1, %s10
  %s13 = scalar_select 0, %s12, %s10
  %v14 = vstv %s6
  %15 = vst [vmem:[#allocation2] sm:$0x1] %v14
  %v16 = vstv %s7
  %17 = vst [vmem:[#allocation3] sm:$0x1] %v16
  %v18 = vstv %s8
  %19 = vst [vmem:[#allocation4] sm:$0x1] %v18
  $region1: #{tpu_custom_call.1} parent=0
    #allocation5 [shape = 'u8[131072]{0}', space=vmem, size = 0x20000, scoped, tag = 'input window, operand 3, single buffered']
    #allocation6 [shape = 's32[1]{0}', space=sflag, size = 0x4, scoped, tag = 'scoped memory for tpu_custom_call.1']
    %20 = vsyncpa [#allocation6], 0
    // Predicated region
    $region2: #{tpu_custom_call.1} parent=1 // pred_check
      _
    $region3: #{tpu_custom_call.1} parent=1 // pred_check_branch
      %22 = sbr.rel (0) target = $region5
    $region4: #{tpu_custom_call.1} parent=1 // pred_region
      _
    $region5: #{tpu_custom_call.1} parent=1 // pred_fallthru
      _
    // Predicated region
    $region6: #{tpu_custom_call.1} parent=1 // pred_check
      _
    $region7: #{tpu_custom_call.1} parent=1 // pred_check_branch
      %24 = sbr.rel (0) target = $region9
    $region8: #{tpu_custom_call.1} parent=1 // pred_region
      _
    $region9: #{tpu_custom_call.1} parent=1 // pred_fallthru
      _
    // Predicated region
    $region10: #{tpu_custom_call.1} parent=1 // pred_check
      _
    $region11: #{tpu_custom_call.1} parent=1 // pred_check_branch
      %26 = sbr.rel (0) target = $region13
    $region12: #{tpu_custom_call.1} parent=1 // pred_region
      _
    $region13: #{tpu_custom_call.1} parent=1 // pred_fallthru
      _
    // Predicated region
    $region14: #{tpu_custom_call.1} parent=1 // pred_check
      _
    $region15: #{tpu_custom_call.1} parent=1 // pred_check_branch
      %28 = sbr.rel (0) target = $region17
    $region16: #{tpu_custom_call.1} parent=1 // pred_region
      %s30 = ssub.s32 4096, 4096
      %31 = vsyncadd [#allocation6], %s30
      %s32 = sshll.u32 [#allocation5], 4
      %s33 = int_to_ptr.vmem [resolvable:$true] %s32
      %38 = dma.hbm_to_vmem [thread:$0]  %s3, 4096, %s33, [#allocation6], 128, 128, 8
    $region17: #{tpu_custom_call.1} parent=1 // pred_fallthru
      _
    // Predicated region
    $region18: #{tpu_custom_call.1} parent=1 // pred_check
      _
    $region19: #{tpu_custom_call.1} parent=1 // pred_check_branch
      %40 = sbr.rel (0) target = $region21
    $region20: #{tpu_custom_call.1} parent=1 // pred_region
      _
    $region21: #{tpu_custom_call.1} parent=1 // pred_fallthru
      _
    // Predicated region
    $region22: #{tpu_custom_call.1} parent=1 // pred_check
      _
    $region23: #{tpu_custom_call.1} parent=1 // pred_check_branch
      %42 = sbr.rel (0) target = $region25
    $region24: #{tpu_custom_call.1} parent=1 // pred_region
      _
    $region25: #{tpu_custom_call.1} parent=1 // pred_fallthru
      _
    // Predicated region
    $region26: #{tpu_custom_call.1} parent=1 // pred_check
      _
    $region27: #{tpu_custom_call.1} parent=1 // pred_check_branch
      %44 = sbr.rel (0) target = $region29
    $region28: #{tpu_custom_call.1} parent=1 // pred_region
      _
    $region29: #{tpu_custom_call.1} parent=1 // pred_fallthru
      _
    // Predicated region
    $region30: #{tpu_custom_call.1} parent=1 // pred_check
      _
    $region31: #{tpu_custom_call.1} parent=1 // pred_check_branch
      %46 = sbr.rel (0) target = $region33
    $region32: #{tpu_custom_call.1} parent=1 // pred_region
      _
    $region33: #{tpu_custom_call.1} parent=1 // pred_fallthru
      _
    // Predicated region
    $region34: #{tpu_custom_call.1} parent=1 // pred_check
      _
    $region35: #{tpu_custom_call.1} parent=1 // pred_check_branch
      %48 = sbr.rel (0) target = $region37
    $region36: #{tpu_custom_call.1} parent=1 // pred_region
      _
    $region37: #{tpu_custom_call.1} parent=1 // pred_fallthru
      _
    // Predicated region
    $region38: #{tpu_custom_call.1} parent=1 // pred_check
      _
    $region39: #{tpu_custom_call.1} parent=1 // pred_check_branch
      %50 = sbr.rel (0) target = $region41
    $region40: #{tpu_custom_call.1} parent=1 // pred_region
      %51 = dma.done [#allocation6], 4096
    $region41: #{tpu_custom_call.1} parent=1 // pred_fallthru
      _
    %v53 = vld [vmem:[%s0] sm:$0xff]
    %v54 = vld [vmem:[%s1] sm:$0xff]
    %56 = vset.pattern.permute.xlu0 0
    %57 = vperm.xlu0 %56, %v53
    %v58 = vpop.permute.xlu0 %57
    %v61 = vlaneseq
    %v62 = vshrl.u32 %v61, 7
    %v63 = vsub.s32 0, %v62
    %v64 = vrot.slane %v54, %v63
    %v65 = vlaneseq
    %v66 = vshrl.u32 %v65, 7
    %v67 = vsub.s32 4, %v66
    %v68 = vrot.slane %v54, %v67
    %v71 = vlaneseq
    %v72 = vshrl.u32 %v71, 7
    %v73 = vsub.s32 0, %v72
    %v74 = vrot.slane %v64, %v73
    %v75 = vlaneseq
    %v76 = vshrl.u32 %v75, 7
    %v77 = vsub.s32 0, %v76
    %v78 = vrot.slane %v68, %v77
    %v79 = vmul.f32 %v58, %v74
    %v80 = vmul.f32 %v58, %v78
    %v81 = vld [vmem:[%s2] sm:$0x3]
    %v83 = vlaneseq
    %v84 = vshrl.u32 %v83, 7
    %v85 = vsub.s32 0, %v84
    %v86 = vrot.slane %v81, %v85
    %v87 = vlaneseq
    %v88 = vshrl.u32 %v87, 7
    %v89 = vsub.s32 1, %v88
    %v90 = vrot.slane %v81, %v89
    %v93 = vadd.f32 %v79, %v86
    %v94 = vadd.f32 %v80, %v90
    %95 = vset.pattern.permute.xlu0 1
    %96 = vperm.xlu0 %95, %v53
    %v97 = vpop.permute.xlu0 %96
    %v99 = vlaneseq
    %v100 = vshrl.u32 %v99, 7
    %v101 = vsub.s32 1, %v100
    %v102 = vrot.slane %v54, %v101
    %v103 = vlaneseq
    %v104 = vshrl.u32 %v103, 7
    %v105 = vsub.s32 5, %v104
    %v106 = vrot.slane %v54, %v105
    %v109 = vlaneseq
    %v110 = vshrl.u32 %v109, 7
    %v111 = vsub.s32 1, %v110
    %v112 = vrot.slane %v102, %v111
    %v113 = vlaneseq
    %v114 = vshrl.u32 %v113, 7
    %v115 = vsub.s32 1, %v114
    %v116 = vrot.slane %v106, %v115
    %v117 = vmul.f32 %v97, %v112
    %v118 = vmul.f32 %v97, %v116
    %v119 = vadd.f32 %v93, %v117
    %v120 = vadd.f32 %v94, %v118
    %121 = vset.pattern.permute.xlu0 2
    %122 = vperm.xlu0 %121, %v53
    %v123 = vpop.permute.xlu0 %122
    %v125 = vlaneseq
    %v126 = vshrl.u32 %v125, 7
    %v127 = vsub.s32 2, %v126
    %v128 = vrot.slane %v54, %v127
    %v129 = vlaneseq
    %v130 = vshrl.u32 %v129, 7
    %v131 = vsub.s32 6, %v130
    %v132 = vrot.slane %v54, %v131
    %v135 = vlaneseq
    %v136 = vshrl.u32 %v135, 7
    %v137 = vsub.s32 2, %v136
    %v138 = vrot.slane %v128, %v137
    %v139 = vlaneseq
    %v140 = vshrl.u32 %v139, 7
    %v141 = vsub.s32 2, %v140
    %v142 = vrot.slane %v132, %v141
    %v143 = vmul.f32 %v123, %v138
    %v144 = vmul.f32 %v123, %v142
    %v145 = vadd.f32 %v119, %v143
    %v146 = vadd.f32 %v120, %v144
    %147 = vset.pattern.permute.xlu0 3
    %148 = vperm.xlu0 %147, %v53
    %v149 = vpop.permute.xlu0 %148
    %v151 = vlaneseq
    %v152 = vshrl.u32 %v151, 7
    %v153 = vsub.s32 3, %v152
    %v154 = vrot.slane %v54, %v153
    %v155 = vlaneseq
    %v156 = vshrl.u32 %v155, 7
    %v157 = vsub.s32 7, %v156
    %v158 = vrot.slane %v54, %v157
    %v161 = vlaneseq
    %v162 = vshrl.u32 %v161, 7
    %v163 = vsub.s32 3, %v162
    %v164 = vrot.slane %v154, %v163
    %v165 = vlaneseq
    %v166 = vshrl.u32 %v165, 7
    %v167 = vsub.s32 3, %v166
    %v168 = vrot.slane %v158, %v167
    %v169 = vmul.f32 %v149, %v164
    %v170 = vmul.f32 %v149, %v168
    %v171 = vadd.f32 %v145, %v169
    %v172 = vadd.f32 %v146, %v170
    %v173 = vmax.f32 %v171, 0.0
    %v174 = vmax.f32 %v172, 0.0
    %v175 = vpack.c.bf16 %v173, %v173
    %v176 = vpack.c.bf16 %v174, %v174
    %v177 = vld [vmem:[#allocation5] sm:$0xff]
    %v178 = vld [vmem:[#allocation5 + $0x8] sm:$0xff]
    %v179 = vld [vmem:[#allocation5 + $0x10] sm:$0xff]
    %v180 = vld [vmem:[#allocation5 + $0x18] sm:$0xff]
    %v181 = vld [vmem:[#allocation5 + $0x20] sm:$0xff]
    %v182 = vld [vmem:[#allocation5 + $0x28] sm:$0xff]
    %v183 = vld [vmem:[#allocation5 + $0x30] sm:$0xff]
    %v184 = vld [vmem:[#allocation5 + $0x38] sm:$0xff]
    %v185 = vld [vmem:[#allocation5 + $0x40] sm:$0xff]
    %v186 = vld [vmem:[#allocation5 + $0x48] sm:$0xff]
    %v187 = vld [vmem:[#allocation5 + $0x50] sm:$0xff]
    %v188 = vld [vmem:[#allocation5 + $0x58] sm:$0xff]
    %v189 = vld [vmem:[#allocation5 + $0x60] sm:$0xff]
    %v190 = vld [vmem:[#allocation5 + $0x68] sm:$0xff]
    %v191 = vld [vmem:[#allocation5 + $0x70] sm:$0xff]
    %v192 = vld [vmem:[#allocation5 + $0x78] sm:$0xff]
    %v193 = vld [vmem:[#allocation5 + $0x80] sm:$0xff]
    %v194 = vld [vmem:[#allocation5 + $0x88] sm:$0xff]
    %v195 = vld [vmem:[#allocation5 + $0x90] sm:$0xff]
    %v196 = vld [vmem:[#allocation5 + $0x98] sm:$0xff]
    %v197 = vld [vmem:[#allocation5 + $0xa0] sm:$0xff]
    %v198 = vld [vmem:[#allocation5 + $0xa8] sm:$0xff]
    %v199 = vld [vmem:[#allocation5 + $0xb0] sm:$0xff]
    %v200 = vld [vmem:[#allocation5 + $0xb8] sm:$0xff]
    %v201 = vld [vmem:[#allocation5 + $0xc0] sm:$0xff]
    %v202 = vld [vmem:[#allocation5 + $0xc8] sm:$0xff]
    %v203 = vld [vmem:[#allocation5 + $0xd0] sm:$0xff]
    %v204 = vld [vmem:[#allocation5 + $0xd8] sm:$0xff]
    %v205 = vld [vmem:[#allocation5 + $0xe0] sm:$0xff]
    %v206 = vld [vmem:[#allocation5 + $0xe8] sm:$0xff]
    %v207 = vld [vmem:[#allocation5 + $0xf0] sm:$0xff]
    %v208 = vld [vmem:[#allocation5 + $0xf8] sm:$0xff]
    %v209 = vld [vmem:[%s4] sm:$0x3]
    %v211 = vlaneseq
    %v212 = vshrl.u32 %v211, 7
    %v213 = vsub.s32 0, %v212
    %v214 = vrot.slane %v209, %v213
    %v215 = vlaneseq
    %v216 = vshrl.u32 %v215, 7
    %v217 = vsub.s32 1, %v216
    %v218 = vrot.slane %v209, %v217
    %v253 = vunpack.c.l.b16 %v177
    %v254 = vunpack.c.h.b16 %v177
    %v255 = vunpack.c.l.b16 %v178
    %v256 = vunpack.c.h.b16 %v178
    %v257 = vunpack.c.l.b16 %v179
    %v258 = vunpack.c.h.b16 %v179
    %v259 = vunpack.c.l.b16 %v180
    %v260 = vunpack.c.h.b16 %v180
    %v261 = vunpack.c.l.b16 %v181
    %v262 = vunpack.c.h.b16 %v181
    %v263 = vunpack.c.l.b16 %v182
    %v264 = vunpack.c.h.b16 %v182
    %v265 = vunpack.c.l.b16 %v183
    %v266 = vunpack.c.h.b16 %v183
    %v267 = vunpack.c.l.b16 %v184
    %v268 = vunpack.c.h.b16 %v184
    %v269 = vunpack.c.l.b16 %v185
    %v270 = vunpack.c.h.b16 %v185
    %v271 = vunpack.c.l.b16 %v186
    %v272 = vunpack.c.h.b16 %v186
    %v273 = vunpack.c.l.b16 %v187
    %v274 = vunpack.c.h.b16 %v187
    %v275 = vunpack.c.l.b16 %v188
    %v276 = vunpack.c.h.b16 %v188
    %v277 = vunpack.c.l.b16 %v189
    %v278 = vunpack.c.h.b16 %v189
    %v279 = vunpack.c.l.b16 %v190
    %v280 = vunpack.c.h.b16 %v190
    %v281 = vunpack.c.l.b16 %v191
    %v282 = vunpack.c.h.b16 %v191
    %v283 = vunpack.c.l.b16 %v192
    %v284 = vunpack.c.h.b16 %v192
    %v285 = vunpack.c.l.b16 %v193
    %v286 = vunpack.c.h.b16 %v193
    %v287 = vunpack.c.l.b16 %v194
    %v288 = vunpack.c.h.b16 %v194
    %v289 = vunpack.c.l.b16 %v195
    %v290 = vunpack.c.h.b16 %v195
    %v291 = vunpack.c.l.b16 %v196
    %v292 = vunpack.c.h.b16 %v196
    %v293 = vunpack.c.l.b16 %v197
    %v294 = vunpack.c.h.b16 %v197
    %v295 = vunpack.c.l.b16 %v198
    %v296 = vunpack.c.h.b16 %v198
    %v297 = vunpack.c.l.b16 %v199
    %v298 = vunpack.c.h.b16 %v199
    %v299 = vunpack.c.l.b16 %v200
    %v300 = vunpack.c.h.b16 %v200
    %v301 = vunpack.c.l.b16 %v201
    %v302 = vunpack.c.h.b16 %v201
    %v303 = vunpack.c.l.b16 %v202
    %v304 = vunpack.c.h.b16 %v202
    %v305 = vunpack.c.l.b16 %v203
    %v306 = vunpack.c.h.b16 %v203
    %v307 = vunpack.c.l.b16 %v204
    %v308 = vunpack.c.h.b16 %v204
    %v309 = vunpack.c.l.b16 %v205
    %v310 = vunpack.c.h.b16 %v205
    %v311 = vunpack.c.l.b16 %v206
    %v312 = vunpack.c.h.b16 %v206
    %v313 = vunpack.c.l.b16 %v207
    %v314 = vunpack.c.h.b16 %v207
    %v315 = vunpack.c.l.b16 %v208
    %v316 = vunpack.c.h.b16 %v208
    %v317 = vpack.c.b16 %v255, %v253
    %v318 = vpack.c.b16 %v256, %v254
    %v319 = vpack.c.b16 %v259, %v257
    %v320 = vpack.c.b16 %v260, %v258
    %v321 = vpack.c.b16 %v263, %v261
    %v322 = vpack.c.b16 %v264, %v262
    %v323 = vpack.c.b16 %v267, %v265
    %v324 = vpack.c.b16 %v268, %v266
    %v325 = vpack.c.b16 %v271, %v269
    %v326 = vpack.c.b16 %v272, %v270
    %v327 = vpack.c.b16 %v275, %v273
    %v328 = vpack.c.b16 %v276, %v274
    %v329 = vpack.c.b16 %v279, %v277
    %v330 = vpack.c.b16 %v280, %v278
    %v331 = vpack.c.b16 %v283, %v281
    %v332 = vpack.c.b16 %v284, %v282
    %v333 = vpack.c.b16 %v287, %v285
    %v334 = vpack.c.b16 %v288, %v286
    %v335 = vpack.c.b16 %v291, %v289
    %v336 = vpack.c.b16 %v292, %v290
    %v337 = vpack.c.b16 %v295, %v293
    %v338 = vpack.c.b16 %v296, %v294
    %v339 = vpack.c.b16 %v299, %v297
    %v340 = vpack.c.b16 %v300, %v298
    %v341 = vpack.c.b16 %v303, %v301
    %v342 = vpack.c.b16 %v304, %v302
    %v343 = vpack.c.b16 %v307, %v305
    %v344 = vpack.c.b16 %v308, %v306
    %v345 = vpack.c.b16 %v311, %v309
    %v346 = vpack.c.b16 %v312, %v310
    %v347 = vpack.c.b16 %v315, %v313
    %v348 = vpack.c.b16 %v316, %v314
    %381 = vmatprep.subr.bf16.mxu0 %v318
    %382 = vmatpush1.bf16.msra.mxu0 %v317
    %383 = vmatprep.subr.bf16.mxu0 %v320
    %384 = vmatpush1.bf16.msra.mxu0 %v319
    %385 = vmatprep.subr.bf16.mxu0 %v322
    %386 = vmatpush1.bf16.msra.mxu0 %v321
    %387 = vmatprep.subr.bf16.mxu0 %v324
    %388 = vmatpush1.bf16.msra.mxu0 %v323
    %389 = vmatprep.subr.bf16.mxu0 %v326
    %390 = vmatpush1.bf16.msra.mxu0 %v325
    %391 = vmatprep.subr.bf16.mxu0 %v328
    %392 = vmatpush1.bf16.msra.mxu0 %v327
    %393 = vmatprep.subr.bf16.mxu0 %v330
    %394 = vmatpush1.bf16.msra.mxu0 %v329
    %395 = vmatprep.subr.bf16.mxu0 %v332
    %396 = vmatpush1.bf16.msra.mxu0 %v331
    %397 = vmatprep.subr.bf16.mxu0 %v334
    %398 = vmatpush1.bf16.msra.mxu0 %v333
    %399 = vmatprep.subr.bf16.mxu0 %v336
    %400 = vmatpush1.bf16.msra.mxu0 %v335
    %401 = vmatprep.subr.bf16.mxu0 %v338
    %402 = vmatpush1.bf16.msra.mxu0 %v337
    %403 = vmatprep.subr.bf16.mxu0 %v340
    %404 = vmatpush1.bf16.msra.mxu0 %v339
    %405 = vmatprep.subr.bf16.mxu0 %v342
    %406 = vmatpush1.bf16.msra.mxu0 %v341
    %407 = vmatprep.subr.bf16.mxu0 %v344
    %408 = vmatpush1.bf16.msra.mxu0 %v343
    %409 = vmatprep.subr.bf16.mxu0 %v346
    %410 = vmatpush1.bf16.msra.mxu0 %v345
    %411 = vmatprep.subr.bf16.mxu0 %v348
    %412 = vmatpush1.bf16.msra.mxu0 %v347
    %413 = vmatprep.mubr.bf16.mxu0 %v176
    %414 = vmatmul.mubr.bf16.gmra.mrb[0].mxu0 %v175
    %v415 = vpop.f32.mrb[0].mxu0
    %v416 = vadd.f32 %v214, %v415
    %v417 = vpop.f32.mrb[0].mxu0
    %v418 = vadd.f32 %v218, %v417
    %v419 = vpop.f32.mrb[0].mxu0
    %v420 = vpop.f32.mrb[0].mxu0
    %421 = vdwg.mxu0
    %v422 = vmax.f32 %v416, 0.0
    %v423 = vmax.f32 %v418, 0.0
    %v424 = vpack.c.bf16 %v422, %v422
    %v425 = vpack.c.bf16 %v423, %v423
    %v426 = vld [vmem:[%s5] sm:$0xf]
    %v427 = vld [vmem:[%s5 + $0x4] sm:$0xf]
    %v428 = vld [vmem:[%s5 + $0x8] sm:$0xf]
    %v429 = vld [vmem:[%s5 + $0xc] sm:$0xf]
    %v430 = vld [vmem:[%s5 + $0x10] sm:$0xf]
    %v431 = vld [vmem:[%s5 + $0x14] sm:$0xf]
    %v432 = vld [vmem:[%s5 + $0x18] sm:$0xf]
    %v433 = vld [vmem:[%s5 + $0x1c] sm:$0xf]
    %v434 = vld [vmem:[%s5 + $0x20] sm:$0xf]
    %v435 = vld [vmem:[%s5 + $0x24] sm:$0xf]
    %v436 = vld [vmem:[%s5 + $0x28] sm:$0xf]
    %v437 = vld [vmem:[%s5 + $0x2c] sm:$0xf]
    %v438 = vld [vmem:[%s5 + $0x30] sm:$0xf]
    %v439 = vld [vmem:[%s5 + $0x34] sm:$0xf]
    %v440 = vld [vmem:[%s5 + $0x38] sm:$0xf]
    %v441 = vld [vmem:[%s5 + $0x3c] sm:$0xf]
    %v442 = vld [vmem:[%s5 + $0x40] sm:$0xf]
    %v443 = vld [vmem:[%s5 + $0x44] sm:$0xf]
    %v444 = vld [vmem:[%s5 + $0x48] sm:$0xf]
    %v445 = vld [vmem:[%s5 + $0x4c] sm:$0xf]
    %v446 = vld [vmem:[%s5 + $0x50] sm:$0xf]
    %v447 = vld [vmem:[%s5 + $0x54] sm:$0xf]
    %v448 = vld [vmem:[%s5 + $0x58] sm:$0xf]
    %v449 = vld [vmem:[%s5 + $0x5c] sm:$0xf]
    %v450 = vld [vmem:[%s5 + $0x60] sm:$0xf]
    %v451 = vld [vmem:[%s5 + $0x64] sm:$0xf]
    %v452 = vld [vmem:[%s5 + $0x68] sm:$0xf]
    %v453 = vld [vmem:[%s5 + $0x6c] sm:$0xf]
    %v454 = vld [vmem:[%s5 + $0x70] sm:$0xf]
    %v455 = vld [vmem:[%s5 + $0x74] sm:$0xf]
    %v456 = vld [vmem:[%s5 + $0x78] sm:$0xf]
    %v457 = vld [vmem:[%s5 + $0x7c] sm:$0xf]
    %v458 = vld [vmem:[#allocation2] sm:$0x1]
    %v460 = vlaneseq
    %v461 = vshrl.u32 %v460, 7
    %v462 = vsub.s32 0, %v461
    %v463 = vrot.slane %v458, %v462
    %v497 = vunpack.c.l.b16 %v426
    %v498 = vunpack.c.l.b16 %v427
    %v499 = vunpack.c.l.b16 %v428
    %v500 = vunpack.c.l.b16 %v429
    %v501 = vunpack.c.l.b16 %v430
    %v502 = vunpack.c.l.b16 %v431
    %v503 = vunpack.c.l.b16 %v432
    %v504 = vunpack.c.l.b16 %v433
    %v505 = vunpack.c.l.b16 %v434
    %v506 = vunpack.c.l.b16 %v435
    %v507 = vunpack.c.l.b16 %v436
    %v508 = vunpack.c.l.b16 %v437
    %v509 = vunpack.c.l.b16 %v438
    %v510 = vunpack.c.l.b16 %v439
    %v511 = vunpack.c.l.b16 %v440
    %v512 = vunpack.c.l.b16 %v441
    %v513 = vunpack.c.l.b16 %v442
    %v514 = vunpack.c.l.b16 %v443
    %v515 = vunpack.c.l.b16 %v444
    %v516 = vunpack.c.l.b16 %v445
    %v517 = vunpack.c.l.b16 %v446
    %v518 = vunpack.c.l.b16 %v447
    %v519 = vunpack.c.l.b16 %v448
    %v520 = vunpack.c.l.b16 %v449
    %v521 = vunpack.c.l.b16 %v450
    %v522 = vunpack.c.l.b16 %v451
    %v523 = vunpack.c.l.b16 %v452
    %v524 = vunpack.c.l.b16 %v453
    %v525 = vunpack.c.l.b16 %v454
    %v526 = vunpack.c.l.b16 %v455
    %v527 = vunpack.c.l.b16 %v456
    %v528 = vunpack.c.l.b16 %v457
    %v529 = vpack.c.b16 %v498, %v497
    %v530 = vpack.c.b16 %v500, %v499
    %v531 = vpack.c.b16 %v502, %v501
    %v532 = vpack.c.b16 %v504, %v503
    %v533 = vpack.c.b16 %v506, %v505
    %v534 = vpack.c.b16 %v508, %v507
    %v535 = vpack.c.b16 %v510, %v509
    %v536 = vpack.c.b16 %v512, %v511
    %v537 = vpack.c.b16 %v514, %v513
    %v538 = vpack.c.b16 %v516, %v515
    %v539 = vpack.c.b16 %v518, %v517
    %v540 = vpack.c.b16 %v520, %v519
    %v541 = vpack.c.b16 %v522, %v521
    %v542 = vpack.c.b16 %v524, %v523
    %v543 = vpack.c.b16 %v526, %v525
    %v544 = vpack.c.b16 %v528, %v527
    %561 = vmatprep.subr.bf16.mxu0 0
    %562 = vmatpush1.bf16.msra.mxu0 %v529
    %563 = vmatprep.subr.bf16.mxu0 0
    %564 = vmatpush1.bf16.msra.mxu0 %v530
    %565 = vmatprep.subr.bf16.mxu0 0
    %566 = vmatpush1.bf16.msra.mxu0 %v531
    %567 = vmatprep.subr.bf16.mxu0 0
    %568 = vmatpush1.bf16.msra.mxu0 %v532
    %569 = vmatprep.subr.bf16.mxu0 0
    %570 = vmatpush1.bf16.msra.mxu0 %v533
    %571 = vmatprep.subr.bf16.mxu0 0
    %572 = vmatpush1.bf16.msra.mxu0 %v534
    %573 = vmatprep.subr.bf16.mxu0 0
    %574 = vmatpush1.bf16.msra.mxu0 %v535
    %575 = vmatprep.subr.bf16.mxu0 0
    %576 = vmatpush1.bf16.msra.mxu0 %v536
    %577 = vmatprep.subr.bf16.mxu0 0
    %578 = vmatpush1.bf16.msra.mxu0 %v537
    %579 = vmatprep.subr.bf16.mxu0 0
    %580 = vmatpush1.bf16.msra.mxu0 %v538
    %581 = vmatprep.subr.bf16.mxu0 0
    %582 = vmatpush1.bf16.msra.mxu0 %v539
    %583 = vmatprep.subr.bf16.mxu0 0
    %584 = vmatpush1.bf16.msra.mxu0 %v540
    %585 = vmatprep.subr.bf16.mxu0 0
    %586 = vmatpush1.bf16.msra.mxu0 %v541
    %587 = vmatprep.subr.bf16.mxu0 0
    %588 = vmatpush1.bf16.msra.mxu0 %v542
    %589 = vmatprep.subr.bf16.mxu0 0
    %590 = vmatpush1.bf16.msra.mxu0 %v543
    %591 = vmatprep.subr.bf16.mxu0 0
    %592 = vmatpush1.bf16.msra.mxu0 %v544
    %593 = vmatprep.mubr.bf16.mxu0 %v425
    %594 = vmatmul.mubr.bf16.gmra.mrb[0].mxu0 %v424
    %v595 = vpop.f32.mrb[0].mxu0
    %v596 = vadd.f32 %v463, %v595
    %v597 = vpop.f32.mrb[0].mxu0
    %v598 = vpop.f32.mrb[0].mxu0
    %v599 = vpop.f32.mrb[0].mxu0
    %600 = vdwg.mxu0
    %v601 = vtanh.pop %v596
    %v602 = vld [vmem:[#allocation3] sm:$0x1]
    %v604 = vlaneseq
    %v605 = vshrl.u32 %v604, 7
    %v606 = vsub.s32 0, %v605
    %v607 = vrot.slane %v602, %v606
    %v609 = vmul.f32 %v607, %v601
    %v610 = vld [vmem:[#allocation4] sm:$0x1]
    %v612 = vlaneseq
    %v613 = vshrl.u32 %v612, 7
    %v614 = vsub.s32 0, %v613
    %v615 = vrot.slane %v610, %v614
    %v617 = vadd.f32 %v609, %v615
    %vm618 = vcmask 7168
    %619 = vst.msk [vmem:[%s9] sm:$0xff] %vm618, %v617
    // Predicated region
    $region42: #{tpu_custom_call.1} parent=1 // pred_check
      _
    $region43: #{tpu_custom_call.1} parent=1 // pred_check_branch
      %621 = sbr.rel (0) target = $region45
    $region44: #{tpu_custom_call.1} parent=1 // pred_region
      _
    $region45: #{tpu_custom_call.1} parent=1 // pred_fallthru
      _
    // Predicated region
    $region46: #{tpu_custom_call.1} parent=1 // pred_check
      _
    $region47: #{tpu_custom_call.1} parent=1 // pred_check_branch
      %623 = sbr.rel (0) target = $region49
    $region48: #{tpu_custom_call.1} parent=1 // pred_region
      _
    $region49: #{tpu_custom_call.1} parent=1 // pred_fallthru
      _
    %624 = vsyncpa [#allocation6], 1

</llo_original>
